<compile_context>
chip_gen: v7x
topology: tpu7x:2x2x1
jax: 0.10.0
libtpu: 0.0.40
codegen_flags: <defaults>
</compile_context>

<pallas_src>
import math
import functools

import jax
import jax.numpy as jnp
from jax.experimental import pallas as pl
from jax.experimental.pallas import tpu as pltpu


def _build_pe(max_len: int, d_model: int) -> jnp.ndarray:
    """Deterministic sinusoidal table, identical math to the torch __init__."""
    position = jnp.arange(0, max_len, dtype=jnp.float32)[:, None]            # (max_len, 1)
    div_term = jnp.exp(jnp.arange(0, d_model, 2, dtype=jnp.float32)
                       * (-math.log(10000.0) / d_model))                      # (d_model/2,)
    pe = jnp.zeros((max_len, d_model), dtype=jnp.float32)
    pe = pe.at[:, 0::2].set(jnp.sin(position * div_term))
    pe = pe.at[:, 1::2].set(jnp.cos(position * div_term))
    return pe                                                                 # (max_len, d_model)


# ---------------------------------------------------------------------------
# Tile selection: biggest (batch_rows, lane) tile that divides (B, L), keeps the
# lane dim a multiple of 128 and stays under ~max_block_bytes per buffer.
# ---------------------------------------------------------------------------
def _largest_divisor(n: int, *, step: int, cap: int):
    """Largest multiple of `step` that divides n and is <= cap (None if none)."""
    if n % step != 0 or cap < step:
        return None
    best = None
    t = step
    cap = min(cap, n)
    while t <= cap:
        if n % t == 0:
            best = t
        t += step
    return best


def _pick_tiles(B: int, L: int, itemsize: int, max_block_bytes: int = 2 << 20):
    max_elems = max(128, max_block_bytes // itemsize)
    if L % 128 != 0:
        # Ragged last dim: fall back to full-extent blocks (the (8,128) escape hatch).
        return B, L
    # Prefer the whole batch per grid step (fewer, fatter steps amortize ~0.35us/step).
    tL = _largest_divisor(L, step=128, cap=max(128, max_elems // B))
    if tL is not None:
        return B, tL
    # Batch too large for one step: tile batch rows in multiples of 8 sublanes.
    tL = _largest_divisor(L, step=128, cap=max(128, max_elems // 8)) or 128
    tB = _largest_divisor(B, step=8, cap=max(8, max_elems // tL))
    return (tB, tL) if tB is not None else (B, 128)


# ---------------------------------------------------------------------------
# Kernels
# ---------------------------------------------------------------------------
def _posemb_add_kernel(x_ref, pe_ref, o_ref):
    # x_ref: (tB, tL); pe_ref: (1, tL) -> cheap sublane broadcast over the batch rows.
    o_ref[...] = (x_ref[...] + pe_ref[...]).astype(o_ref.dtype)


def _posemb_add_dropout_kernel(x_ref, pe_ref, bits_ref, o_ref, *, threshold, scale):
    # Inverted dropout with an integer-threshold compare and fused keep-scale.
    y = x_ref[...] + pe_ref[...]
    keep = bits_ref[...] >= jnp.uint32(threshold)
    o_ref[...] = jnp.where(keep, y * scale, jnp.zeros_like(y)).astype(o_ref.dtype)


# ---------------------------------------------------------------------------
# Module wrapper
# ---------------------------------------------------------------------------
class PositionalEmbedding:
    """JAX/Pallas port of breaching PositionalEmbedding."""

    def __init__(self, d_model: int, dropout: float = 0.1, max_len: int = 5000):
        self.d_model = d_model
        self.p = float(dropout)
        self.pe = _build_pe(max_len, d_model)          # (max_len, d_model), float32

    def __call__(self, x: jnp.ndarray, *, training: bool = False, rng_key=None):
        B, S, D = x.shape
        assert D == self.d_model
        L = S * D
        dtype = x.dtype

        # Lane-dense flattened views; cast pe once to the compute dtype.
        x2 = x.reshape(B, L)
        pe2 = self.pe[:S, :].astype(dtype).reshape(1, L)

        tB, tL = _pick_tiles(B, L, jnp.dtype(dtype).itemsize)
        grid = (B // tB, L // tL)

        compiler_params = pltpu.CompilerParams(
            dimension_semantics=("parallel", "parallel"),
            # Explicit scoped-VMEM budget; tiles are sized so double-buffering fits on
            # v5e (16 MiB default) and v7x (32 MiB scoped / 64 MiB physical) as well.
            vmem_limit_bytes=32 * 1024 * 1024,
        )

        x_spec = pl.BlockSpec((tB, tL), lambda bi, li: (bi, li))
        pe_spec = pl.BlockSpec((1, tL), lambda bi, li: (0, li))
        out_spec = pl.BlockSpec((tB, tL), lambda bi, li: (bi, li))

        if (not training) or self.p == 0.0:
            out2 = pl.pallas_call(
                _posemb_add_kernel,
                out_shape=jax.ShapeDtypeStruct((B, L), dtype),
                grid_spec=pltpu.PrefetchScalarGridSpec(
                    num_scalar_prefetch=0,
                    grid=grid,
                    in_specs=[x_spec, pe_spec],
                    out_specs=out_spec,
                ),
                compiler_params=compiler_params,
            )(x2, pe2)
            return out2.reshape(B, S, D)

        # Training-mode inverted dropout (mask from jax.random; not bit-matched to torch RNG).
        if rng_key is None:
            rng_key = jax.random.PRNGKey(0)
        bits = jax.random.bits(rng_key, (B, L), dtype=jnp.uint32)
        threshold = min(int(round(self.p * (2 ** 32))), 2 ** 32 - 1)
        scale = 1.0 / (1.0 - self.p)

        out2 = pl.pallas_call(
            functools.partial(_posemb_add_dropout_kernel,
                              threshold=threshold, scale=scale),
            out_shape=jax.ShapeDtypeStruct((B, L), dtype),
            grid_spec=pltpu.PrefetchScalarGridSpec(
                num_scalar_prefetch=0,
                grid=grid,
                in_specs=[x_spec, pe_spec, x_spec],   # bits tiled exactly like x
                out_specs=out_spec,
            ),
            compiler_params=compiler_params,
        )(x2, pe2, bits)
        return out2.reshape(B, S, D)


if __name__ == "__main__":
    key = jax.random.PRNGKey(0)
    B, S, D = 2, 8, 32
    x = jax.random.normal(key, (B, S, D), dtype=jnp.float32)

    module = PositionalEmbedding(d_model=D, dropout=0.1, max_len=64)

    # Eval-mode forward (dropout == identity).
    out = jax.block_until_ready(module(x, training=False))
    ref = x + module.pe[None, :S, :]
    assert out.shape == (B, S, D)
    assert jnp.allclose(out, ref, atol=1e-6), "eval mismatch vs reference"

    # Training-mode forward; mask bits are deterministic from the key, so we can check
    # the kernel bit-for-bit against a plain-JAX reference using the same bits.
    drop_key = jax.random.PRNGKey(1)
    out_tr = jax.block_until_ready(module(x, training=True, rng_key=drop_key))
    bits = jax.random.bits(drop_key, (B, S * D), dtype=jnp.uint32).reshape(B, S, D)
    thresh = jnp.uint32(min(int(round(0.1 * (2 ** 32))), 2 ** 32 - 1))
    ref_tr = jnp.where(bits >= thresh, ref * (1.0 / 0.9), 0.0)
    assert out_tr.shape == (B, S, D)
    assert jnp.allclose(out_tr, ref_tr, atol=1e-6), "train mismatch vs reference"

    print("KERNEL_OK")
</pallas_src>

<mosaic_0001>
module attributes {stable_mosaic.version = 11 : i64} {
  func.func @_posemb_add_kernel(%arg0: i32, %arg1: i32, %arg2: memref<2x256xf32, #tpu.memory_space<vmem>>, %arg3: memref<1x256xf32, #tpu.memory_space<vmem>>, %arg4: memref<2x256xf32, #tpu.memory_space<vmem>>) attributes {dimension_semantics = [#tpu.dimension_semantics<parallel>, #tpu.dimension_semantics<parallel>], iteration_bounds = array<i64: 1, 1>, scalar_prefetch = 0 : i64, scratch_operands = 0 : i64, tpu.core_type = #tpu.core_type<tc>, window_params = [{transform_indices = @transform_0, window_bounds = array<i64: 2, 256>}, {transform_indices = @transform_1, window_bounds = array<i64: 1, 256>}, {transform_indices = @transform_2, window_bounds = array<i64: 2, 256>}]} {
    %c0 = arith.constant 0 : index
    %c0_0 = arith.constant 0 : index
    %0 = vector.load %arg2[%c0, %c0_0] : memref<2x256xf32, #tpu.memory_space<vmem>>, vector<2x256xf32>
    %c0_1 = arith.constant 0 : index
    %c0_2 = arith.constant 0 : index
    %1 = vector.load %arg3[%c0_1, %c0_2] : memref<1x256xf32, #tpu.memory_space<vmem>>, vector<1x256xf32>
    %2 = vector.broadcast %1 : vector<1x256xf32> to vector<2x256xf32>
    %3 = arith.addf %0, %2 : vector<2x256xf32>
    %c0_3 = arith.constant 0 : index
    %c0_4 = arith.constant 0 : index
    %4 = vector.load %arg4[%c0_3, %c0_4] : memref<2x256xf32, #tpu.memory_space<vmem>>, vector<2x256xf32>
    tpu.vector_store %arg4[%c0_3, %c0_4], %3 {strides = array<i32>} : memref<2x256xf32, #tpu.memory_space<vmem>>, vector<2x256xf32>,
    return
  }
  func.func @transform_0(%arg0: i32, %arg1: i32) -> (i32, i32) {
    %c0_i32 = arith.constant 0 : i32
    return %arg0, %arg1 : i32, i32
  }
  func.func @transform_1(%arg0: i32, %arg1: i32) -> (i32, i32) {
    %c0_i32 = arith.constant 0 : i32
    %c0_i32_0 = arith.constant 0 : i32
    return %c0_i32, %arg1 : i32, i32
  }
  func.func @transform_2(%arg0: i32, %arg1: i32) -> (i32, i32) {
    %c0_i32 = arith.constant 0 : i32
    return %arg0, %arg1 : i32, i32
  }
}

</mosaic_0001>

<llo_original>
// kernel: tpu_custom_call.1
$region0: #{tpu_custom_call.1}
  #allocation0 [shape = 'u32[]', space=smem, size = 0x4, offset = 0x4, fixed_abs, tag = 'smem constant byte address 0x4 - core index']
  #allocation1 [shape = 'u32[144,128]{1,0:T(1,128)}', space=vmem, size = 0x12000, scoped, tag = 'internal scratch']
  %s0 = inlined_call_operand.hbm [shape: f32[2,256], index: 0, kind: input, shape index: {}]
  %s1 = inlined_call_operand.vmem [shape: f32[1,256], index: 1, kind: input, shape index: {}]
  %s2 = inlined_call_operand.hbm [shape: f32[2,256], index: 2, kind: output, shape index: {}]
  %s3 = sld [smem:[#allocation0]]
  $region22: #{tpu_custom_call.1} parent=0
    _
  %s5 = ssub.s32 1, %s3
  %s6 = scalar_select 0, %s5, %s3
  $region1: #{tpu_custom_call.1} parent=0
    #allocation2 [shape = 'u8[2048]{0}', space=vmem, size = 0x800, scoped, tag = 'input window, operand 0, single buffered']
    #allocation3 [shape = 's32[1]{0}', space=sflag, size = 0x4, scoped, tag = 'scoped memory for tpu_custom_call.1']
    #allocation4 [shape = 's32[1]{0}', space=sflag, size = 0x4, scoped, tag = 'scoped memory for tpu_custom_call.1']
    #allocation5 [shape = 'u8[2048]{0}', space=vmem, size = 0x800, scoped, tag = 'output window, operand 0, single buffered']
    %7 = vsyncpa [#allocation3], 0
    %8 = vsyncpa [#allocation4], 0
    // Predicated region
    $region2: #{tpu_custom_call.1} parent=1 // pred_check
      _
    $region3: #{tpu_custom_call.1} parent=1 // pred_check_branch
      %10 = sbr.rel (0) target = $region5
    $region4: #{tpu_custom_call.1} parent=1 // pred_region
      %s12 = ssub.s32 64, 64
      %13 = vsyncadd [#allocation3], %s12
      %s15 = sshll.u32 [#allocation2], 4
      %s16 = int_to_ptr.vmem [resolvable:$true] %s15
      %18 = dma.hbm_to_vmem [thread:$0]  %s0, 64, %s16, [#allocation3]
    $region5: #{tpu_custom_call.1} parent=1 // pred_fallthru
      _
    // Predicated region
    $region6: #{tpu_custom_call.1} parent=1 // pred_check
      _
    $region7: #{tpu_custom_call.1} parent=1 // pred_check_branch
      %20 = sbr.rel (0) target = $region9
    $region8: #{tpu_custom_call.1} parent=1 // pred_region
      _
    $region9: #{tpu_custom_call.1} parent=1 // pred_fallthru
      _
    // Predicated region
    $region10: #{tpu_custom_call.1} parent=1 // pred_check
      _
    $region11: #{tpu_custom_call.1} parent=1 // pred_check_branch
      %22 = sbr.rel (0) target = $region13
    $region12: #{tpu_custom_call.1} parent=1 // pred_region
      %23 = dma.done [#allocation3], 64
    $region13: #{tpu_custom_call.1} parent=1 // pred_fallthru
      _
    %v24 = vld [vmem:[#allocation2] sm:$0xf]
    %v25 = vld [vmem:[%s1] sm:$0x3]
    %v27 = vlaneseq
    %v28 = vshrl.u32 %v27, 7
    %v29 = vsub.s32 0, %v28
    %v30 = vrot.slane %v25, %v29
    %v31 = vlaneseq
    %v32 = vshrl.u32 %v31, 7
    %v33 = vsub.s32 1, %v32
    %v34 = vrot.slane %v25, %v33
    %v35 = vcombine.low %v30, %v34
    %v37 = vunpack.c.l.s4 1983009808
    %v38 = vunpack.c.0.s8 %v37
    %v39 = vlaneseq
    %v40 = vshrl.u32 %v39, 7
    %v41 = vsub.s32 %v38, %v40
    %v42 = vrot.slane %v35, %v41
    %v44 = vadd.f32 %v24, %v42
    %45 = vst [vmem:[#allocation5] sm:$0xf] %v44
    // Predicated region
    $region14: #{tpu_custom_call.1} parent=1 // pred_check
      _
    $region15: #{tpu_custom_call.1} parent=1 // pred_check_branch
      %47 = sbr.rel (0) target = $region17
    $region16: #{tpu_custom_call.1} parent=1 // pred_region
      %s49 = ssub.s32 64, 64
      %50 = vsyncadd [#allocation4], %s49
      %s52 = sshll.u32 [#allocation5], 4
      %s53 = int_to_ptr.vmem [resolvable:$true] %s52
      %55 = dma.vmem_to_hbm [thread:$0]  %s53, 64, %s2, [#allocation4]
    $region17: #{tpu_custom_call.1} parent=1 // pred_fallthru
      _
    // Predicated region
    $region18: #{tpu_custom_call.1} parent=1 // pred_check
      _
    $region19: #{tpu_custom_call.1} parent=1 // pred_check_branch
      %57 = sbr.rel (0) target = $region21
    $region20: #{tpu_custom_call.1} parent=1 // pred_region
      %58 = dma.done [#allocation4], 64
    $region21: #{tpu_custom_call.1} parent=1 // pred_fallthru
      _
    %59 = vsyncpa [#allocation3], 1
    %60 = vsyncpa [#allocation4], 1

</llo_original>
